<compile_context>
chip_gen: v7x
topology: tpu7x:2x2x1
jax: 0.10.0
libtpu: 0.0.40
codegen_flags: <defaults>
</compile_context>

<pallas_src>
import functools

import jax
import jax.numpy as jnp
from jax.experimental import pallas as pl
from jax.experimental.pallas import tpu as pltpu


def _round_up(x, m):
    return ((x + m - 1) // m) * m


# ---------------------------------------------------------------------------
# Fast path: embedding tables small enough to stay VMEM-resident.
# ---------------------------------------------------------------------------
def _plus_kernel_vmem(u_ids_ref, i_ids_ref, u_tbl_ref, i_tbl_ref, w_ref,
                      inf_ref, reg_ref):
    f32 = jnp.float32
    tile_b = u_ids_ref.shape[-1]        # batch columns in this tile (multiple of 128)
    nu = u_tbl_ref.shape[1]             # num_users (table passed transposed: (D, nu))
    ni = i_tbl_ref.shape[1]             # num_items
    tdt = u_tbl_ref.dtype

    uids = u_ids_ref[0]                 # (1, tile_b) int32, batch on lanes
    iids = i_ids_ref[0]                 # (1, tile_b)

    # One-hot gather on the MXU — no per-row DMA descriptors, semaphores or waits.
    # Padded columns carry id == -1 -> all-zero one-hot column -> zero embedding.
    oh_u = (jax.lax.broadcasted_iota(jnp.int32, (nu, tile_b), 0) == uids).astype(tdt)
    oh_i = (jax.lax.broadcasted_iota(jnp.int32, (ni, tile_b), 0) == iids).astype(tdt)

    # (D, tile_b) f32 embeddings — batch on the lane axis (lane-dense for D < 128).
    u_t = jnp.dot(u_tbl_ref[...], oh_u, preferred_element_type=f32)
    i_t = jnp.dot(i_tbl_ref[...], oh_i, preferred_element_type=f32)

    # Fused constrain(): clamp the (single) FC row's L2 norm to >= 1.
    w = w_ref[...].astype(f32)          # (D, 1)
    wn = jnp.sqrt(jnp.sum(w * w))
    w = w / jnp.maximum(wn, 1.0)

    # inferences^T = w . (u + i), reduced over D (sublanes) -> (1, tile_b) lane-dense store.
    s_t = u_t + i_t
    inf_ref[0] = jnp.sum(s_t * w, axis=0, keepdims=True)

    # Per-tile partial sums of squares for regs (padded columns are exactly zero).
    ssu = jnp.sum(u_t * u_t)
    ssi = jnp.sum(i_t * i_t)
    row = jax.lax.broadcasted_iota(jnp.int32, (1, 8, 128), 1)
    reg_ref[...] = jnp.where(row == 0, ssu, ssi)    # sublane 0 = ssu, sublanes 1.. = ssi


def _plus_forward_vmem(users, items, users_emb_table, items_emb_table, fc_weight, reg):
    B = users.shape[0]
    num_users, D = users_emb_table.shape
    num_items = items_emb_table.shape[0]

    # Lane-dense batch tiling: tile_b is a multiple of 128 (batch lives on the lane axis).
    # Budget the f32 working set (one-hots + u, i, s + headroom) at ~12 MiB so the kernel
    # fits v7x's 64 MiB VMEM with margin and still uses large tiles on v5e/v6e.
    per_col_bytes = 4 * (num_users + num_items + 4 * D + 16)
    budget = 12 * 1024 * 1024
    tb = max(128, min(2048, (budget // per_col_bytes) // 128 * 128))
    tb = min(tb, _round_up(B, 128))
    padded_B = _round_up(B, tb)
    num_tiles = padded_B // tb

    # Pad ids with -1: padded columns match no table row -> zero embedding -> they add
    # nothing to the reg partials and their inference columns are sliced off below.
    u_ids = jnp.full((padded_B,), -1, jnp.int32).at[:B].set(users.astype(jnp.int32))
    i_ids = jnp.full((padded_B,), -1, jnp.int32).at[:B].set(items.astype(jnp.int32))
    u_ids = u_ids.reshape(num_tiles, 1, tb)
    i_ids = i_ids.reshape(num_tiles, 1, tb)

    # Batch-on-lanes layout: pass the (small, VMEM-resident) tables and the FC weight
    # transposed so the kernel's working set is (D, tile_b) and every store is lane-dense.
    u_tbl_t = users_emb_table.T          # (D, num_users)
    i_tbl_t = items_emb_table.T          # (D, num_items)
    w_t = fc_weight.T                    # (D, 1)

    grid_spec = pltpu.PrefetchScalarGridSpec(
        num_scalar_prefetch=0,
        grid=(num_tiles,),
        in_specs=[
            pl.BlockSpec((1, 1, tb), lambda t: (t, 0, 0)),           # user ids (tile)
            pl.BlockSpec((1, 1, tb), lambda t: (t, 0, 0)),           # item ids (tile)
            pl.BlockSpec((D, num_users), lambda t: (0, 0)),          # users table (resident)
            pl.BlockSpec((D, num_items), lambda t: (0, 0)),          # items table (resident)
            pl.BlockSpec((D, 1), lambda t: (0, 0)),                  # raw FC weight
        ],
        out_specs=(
            pl.BlockSpec((1, 1, tb), lambda t: (t, 0, 0)),           # inferences (lane-dense)
            pl.BlockSpec((1, 8, 128), lambda t: (t, 0, 0)),          # merged reg partials
        ),
    )

    inf_t, reg_part = pl.pallas_call(
        _plus_kernel_vmem,
        out_shape=(
            jax.ShapeDtypeStruct((num_tiles, 1, tb), jnp.float32),
            jax.ShapeDtypeStruct((num_tiles, 8, 128), jnp.float32),
        ),
        grid_spec=grid_spec,
        compiler_params=pltpu.CompilerParams(
            dimension_semantics=("parallel",),     # batch tiles independent -> 2-TC megacore
            vmem_limit_bytes=64 * 1024 * 1024,     # actual footprint budgeted far below this
        ),
    )(u_ids, i_ids, u_tbl_t, i_tbl_t, w_t)

    inferences = inf_t.reshape(padded_B, 1)[:B]
    # Accumulate-then-sqrt: ||x||_F over the whole batch, not a sum of block norms.
    ssu = jnp.sum(reg_part[:, 0, 0])
    ssi = jnp.sum(reg_part[:, 1, 0])
    regs = jnp.asarray(reg, jnp.float32) * (jnp.sqrt(ssu) + jnp.sqrt(ssi))
    return inferences, regs


# ---------------------------------------------------------------------------
# Fallback path: tables too large for VMEM -> per-row DMA gather from HBM.
# (Not exercised by the demo below; kept for large-table generality.)
# ---------------------------------------------------------------------------
def _plus_kernel_hbm(users_ref, items_ref, users_tbl, items_tbl, w_ref,
                     inf_ref, reg_ref, u_buf, i_buf, sem, *, valid_b, tile_b):
    t = pl.program_id(0)
    base = t * tile_b

    # One row DMA per (user, item) into VMEM scratch.
    @pl.loop(0, tile_b)
    def _start(r):
        uidx = users_ref[base + r]
        iidx = items_ref[base + r]
        pltpu.make_async_copy(users_tbl.at[uidx], u_buf.at[r], sem.at[0, r]).start()
        pltpu.make_async_copy(items_tbl.at[iidx], i_buf.at[r], sem.at[1, r]).start()

    @pl.loop(0, tile_b)
    def _wait(r):
        pltpu.make_async_copy(users_tbl.at[0], u_buf.at[r], sem.at[0, r]).wait()
        pltpu.make_async_copy(items_tbl.at[0], i_buf.at[r], sem.at[1, r]).wait()

    u = u_buf[...].astype(jnp.float32)       # (tile_b, D)
    it = i_buf[...].astype(jnp.float32)

    w = w_ref[...].astype(jnp.float32)       # (1, D)
    wn = jnp.sqrt(jnp.sum(w * w))
    w = w / jnp.maximum(wn, 1.0)

    s = u + it
    inf_ref[...] = jnp.sum(s * w, axis=1, keepdims=True)   # (tile_b, 1)

    # Mask rows past the true batch size (padded rows gather row 0 of each table).
    row_ids = base + jax.lax.broadcasted_iota(jnp.int32, (tile_b, 1), 0)
    valid = (row_ids < valid_b).astype(jnp.float32)
    ssu = jnp.sum(u * u * valid)
    ssi = jnp.sum(it * it * valid)
    row = jax.lax.broadcasted_iota(jnp.int32, (1, 8, 128), 1)
    reg_ref[...] = jnp.where(row == 0, ssu, ssi)


def _plus_forward_hbm(users, items, users_emb_table, items_emb_table, fc_weight, reg):
    B = users.shape[0]
    D = users_emb_table.shape[1]
    tbl_dtype = users_emb_table.dtype
    itemsize = jnp.dtype(tbl_dtype).itemsize

    budget_bytes = 8 * 1024 * 1024
    tb = budget_bytes // (2 * D * itemsize)
    tb = int(max(8, min(512, (tb // 8) * 8)))
    tb = min(tb, _round_up(B, 8))
    padded_B = _round_up(B, tb)
    num_tiles = padded_B // tb

    users_i = jnp.zeros((padded_B,), jnp.int32).at[:B].set(users.astype(jnp.int32))
    items_i = jnp.zeros((padded_B,), jnp.int32).at[:B].set(items.astype(jnp.int32))

    kernel = functools.partial(_plus_kernel_hbm, valid_b=B, tile_b=tb)

    grid_spec = pltpu.PrefetchScalarGridSpec(
        num_scalar_prefetch=2,
        grid=(num_tiles,),
        in_specs=[
            pl.BlockSpec(memory_space=pl.ANY),    # users table stays in HBM
            pl.BlockSpec(memory_space=pl.ANY),    # items table stays in HBM
            pl.BlockSpec((1, D), lambda t, u_ids, i_ids: (0, 0)),
        ],
        out_specs=(
            pl.BlockSpec((tb, 1), lambda t, u_ids, i_ids: (t, 0)),
            pl.BlockSpec((1, 8, 128), lambda t, u_ids, i_ids: (t, 0, 0)),
        ),
        scratch_shapes=[
            pltpu.VMEM((tb, D), tbl_dtype),
            pltpu.VMEM((tb, D), tbl_dtype),
            pltpu.SemaphoreType.DMA((2, tb)),
        ],
    )

    inf_pad, reg_part = pl.pallas_call(
        kernel,
        out_shape=(
            jax.ShapeDtypeStruct((padded_B, 1), jnp.float32),
            jax.ShapeDtypeStruct((num_tiles, 8, 128), jnp.float32),
        ),
        grid_spec=grid_spec,
        compiler_params=pltpu.CompilerParams(
            dimension_semantics=("parallel",),
            vmem_limit_bytes=64 * 1024 * 1024,
        ),
    )(users_i, items_i, users_emb_table, items_emb_table, fc_weight)

    inferences = inf_pad[:B]
    ssu = jnp.sum(reg_part[:, 0, 0])
    ssi = jnp.sum(reg_part[:, 1, 0])
    regs = jnp.asarray(reg, jnp.float32) * (jnp.sqrt(ssu) + jnp.sqrt(ssi))
    return inferences, regs


# ---------------------------------------------------------------------------
# Dispatcher: fused forward of `Plus`.
# ---------------------------------------------------------------------------
def plus_forward(users, items, users_emb_table, items_emb_table, fc_weight, reg):
    num_users, D = users_emb_table.shape
    num_items = items_emb_table.shape[0]
    tbl_bytes_f32 = 4 * D * (num_users + num_items)
    if num_users <= 1024 and num_items <= 1024 and tbl_bytes_f32 <= 8 * 1024 * 1024:
        return _plus_forward_vmem(users, items, users_emb_table, items_emb_table,
                                  fc_weight, reg)
    return _plus_forward_hbm(users, items, users_emb_table, items_emb_table,
                             fc_weight, reg)


if __name__ == "__main__":
    # Small, deterministic problem consistent with the module's __init__.
    num_users, num_items = 10, 12
    embedding_dim = 32
    batch = 8
    reg = 0.01

    key = jax.random.PRNGKey(0)
    k_u, k_i, k_w, k_uid, k_iid = jax.random.split(key, 5)

    users_emb_table = jax.random.normal(k_u, (num_users, embedding_dim), dtype=jnp.float32)
    items_emb_table = jax.random.normal(k_i, (num_items, embedding_dim), dtype=jnp.float32)
    bound = 1.0 / (embedding_dim ** 0.5)
    fc_weight = jax.random.uniform(
        k_w, (1, embedding_dim), minval=-bound, maxval=bound, dtype=jnp.float32
    )

    users = jax.random.randint(k_uid, (batch,), 0, num_users, dtype=jnp.int32)
    items = jax.random.randint(k_iid, (batch,), 0, num_items, dtype=jnp.int32)

    fwd = jax.jit(plus_forward)
    inferences, regs = fwd(users, items, users_emb_table, items_emb_table, fc_weight, reg)
    inferences = jax.block_until_ready(inferences)
    regs = jax.block_until_ready(regs)

    # Pure-JAX reference (same semantics as the PyTorch forward).
    c = jnp.sqrt(jnp.sum(fc_weight * fc_weight, axis=1, keepdims=True))
    c = jnp.where(c < 1.0, 1.0, c)
    w_ref = fc_weight / c
    u_ref = users_emb_table[users]
    i_ref = items_emb_table[items]
    inf_ref = (u_ref + i_ref) @ w_ref.T
    regs_ref = reg * (jnp.linalg.norm(u_ref) + jnp.linalg.norm(i_ref))

    assert inferences.shape == (batch, 1)
    assert jnp.allclose(inferences, inf_ref, atol=1e-5, rtol=1e-5)
    assert jnp.allclose(regs, regs_ref, atol=1e-5, rtol=1e-5)

    print("KERNEL_OK")
</pallas_src>

<mosaic_0001>
module attributes {stable_mosaic.version = 11 : i64} {
  func.func @_plus_kernel_vmem(%arg0: i32, %arg1: memref<1x1x128xi32, #tpu.memory_space<vmem>>, %arg2: memref<1x1x128xi32, #tpu.memory_space<vmem>>, %arg3: memref<32x10xf32, #tpu.memory_space<vmem>>, %arg4: memref<32x12xf32, #tpu.memory_space<vmem>>, %arg5: memref<32x1xf32, #tpu.memory_space<vmem>>, %arg6: memref<1x1x128xf32, #tpu.memory_space<vmem>>, %arg7: memref<1x8x128xf32, #tpu.memory_space<vmem>>) attributes {dimension_semantics = [#tpu.dimension_semantics<parallel>], iteration_bounds = array<i64: 1>, scalar_prefetch = 0 : i64, scratch_operands = 0 : i64, tpu.core_type = #tpu.core_type<tc>, window_params = [{transform_indices = @transform_0, window_bounds = array<i64: 1, 1, 128>}, {transform_indices = @transform_1, window_bounds = array<i64: 1, 1, 128>}, {pipeline_mode = #tpu.pipeline_mode<synchronous>, transform_indices = @transform_2, window_bounds = array<i64: 32, 10>}, {pipeline_mode = #tpu.pipeline_mode<synchronous>, transform_indices = @transform_3, window_bounds = array<i64: 32, 12>}, {pipeline_mode = #tpu.pipeline_mode<synchronous>, transform_indices = @transform_4, window_bounds = array<i64: 32, 1>}, {transform_indices = @transform_5, window_bounds = array<i64: 1, 1, 128>}, {transform_indices = @transform_6, window_bounds = array<i64: 1, 8, 128>}]} {
    %c0 = arith.constant 0 : index
    %c0_0 = arith.constant 0 : index
    %c0_1 = arith.constant 0 : index
    %0 = vector.load %arg1[%c0, %c0_0, %c0_1] : memref<1x1x128xi32, #tpu.memory_space<vmem>>, vector<1x1x128xi32>
    %1 = vector.shape_cast %0 : vector<1x1x128xi32> to vector<1x128xi32>
    %c0_2 = arith.constant 0 : index
    %c0_3 = arith.constant 0 : index
    %c0_4 = arith.constant 0 : index
    %2 = vector.load %arg2[%c0_2, %c0_3, %c0_4] : memref<1x1x128xi32, #tpu.memory_space<vmem>>, vector<1x1x128xi32>
    %3 = vector.shape_cast %2 : vector<1x1x128xi32> to vector<1x128xi32>
    %4 = tpu.iota {dimensions = array<i32: 0>} : vector<10x128xi32>
    %5 = vector.broadcast %1 : vector<1x128xi32> to vector<10x128xi32>
    %6 = arith.cmpi eq, %4, %5 : vector<10x128xi32>
    %7 = arith.extui %6 : vector<10x128xi1> to vector<10x128xi32>
    %8 = arith.sitofp %7 : vector<10x128xi32> to vector<10x128xf32>
    %9 = tpu.iota {dimensions = array<i32: 0>} : vector<12x128xi32>
    %10 = vector.broadcast %3 : vector<1x128xi32> to vector<12x128xi32>
    %11 = arith.cmpi eq, %9, %10 : vector<12x128xi32>
    %12 = arith.extui %11 : vector<12x128xi1> to vector<12x128xi32>
    %13 = arith.sitofp %12 : vector<12x128xi32> to vector<12x128xf32>
    %c0_5 = arith.constant 0 : index
    %c0_6 = arith.constant 0 : index
    %14 = vector.load %arg3[%c0_5, %c0_6] : memref<32x10xf32, #tpu.memory_space<vmem>>, vector<32x10xf32>
    %cst = arith.constant dense<0.000000e+00> : vector<32x128xf32>
    %15 = tpu.matmul %14, %8, %cst {dimension_numbers = #tpu.dot_dimension_numbers<[1], [0], [0], [1], [0, 0, 1, 1], [], []>} : vector<32x10xf32>, vector<10x128xf32>, vector<32x128xf32> -> vector<32x128xf32>
    %c0_7 = arith.constant 0 : index
    %c0_8 = arith.constant 0 : index
    %16 = vector.load %arg4[%c0_7, %c0_8] : memref<32x12xf32, #tpu.memory_space<vmem>>, vector<32x12xf32>
    %cst_9 = arith.constant dense<0.000000e+00> : vector<32x128xf32>
    %17 = tpu.matmul %16, %13, %cst_9 {dimension_numbers = #tpu.dot_dimension_numbers<[1], [0], [0], [1], [0, 0, 1, 1], [], []>} : vector<32x12xf32>, vector<12x128xf32>, vector<32x128xf32> -> vector<32x128xf32>
    %c0_10 = arith.constant 0 : index
    %c0_11 = arith.constant 0 : index
    %18 = vector.load %arg5[%c0_10, %c0_11] : memref<32x1xf32, #tpu.memory_space<vmem>>, vector<32x1xf32>
    %19 = arith.mulf %18, %18 : vector<32x1xf32>
    %20 = vector.shape_cast %19 : vector<32x1xf32> to vector<1x32x1xf32>
    %cst_12 = arith.constant dense<0.000000e+00> : vector<1xf32>
    %21 = vector.multi_reduction <add>, %20, %cst_12 [1, 2] : vector<1x32x1xf32> to vector<1xf32>
    %22 = vector.shape_cast %21 : vector<1xf32> to vector<1x1x1xf32>
    %23 = vector.extract %22[0, 0, 0] : f32 from vector<1x1x1xf32>
    %24 = math.sqrt %23 : f32
    %cst_13 = arith.constant 1.000000e+00 : f32
    %25 = arith.maximumf %24, %cst_13 : f32
    %26 = vector.broadcast %25 : f32 to vector<32x1xf32>
    %27 = arith.divf %18, %26 : vector<32x1xf32>
    %28 = arith.addf %15, %17 : vector<32x128xf32>
    %29 = vector.broadcast %27 : vector<32x1xf32> to vector<32x128xf32>
    %30 = arith.mulf %28, %29 : vector<32x128xf32>
    %cst_14 = arith.constant dense<0.000000e+00> : vector<128xf32>
    %31 = vector.multi_reduction <add>, %30, %cst_14 [0] : vector<32x128xf32> to vector<128xf32>
    %32 = vector.shape_cast %31 : vector<128xf32> to vector<1x128xf32>
    %c0_15 = arith.constant 0 : index
    %c0_16 = arith.constant 0 : index
    %c0_17 = arith.constant 0 : index
    %33 = vector.load %arg6[%c0_15, %c0_16, %c0_17] : memref<1x1x128xf32, #tpu.memory_space<vmem>>, vector<1x1x128xf32>
    %34 = vector.shape_cast %33 : vector<1x1x128xf32> to vector<1x128xf32>
    %35 = vector.shape_cast %32 : vector<1x128xf32> to vector<1x1x128xf32>
    tpu.vector_store %arg6[%c0_15, %c0_16, %c0_17], %35 {strides = array<i32>} : memref<1x1x128xf32, #tpu.memory_space<vmem>>, vector<1x1x128xf32>,
    %36 = arith.mulf %15, %15 : vector<32x128xf32>
    %37 = vector.shape_cast %36 : vector<32x128xf32> to vector<1x32x128xf32>
    %cst_18 = arith.constant dense<0.000000e+00> : vector<1xf32>
    %38 = vector.multi_reduction <add>, %37, %cst_18 [1, 2] : vector<1x32x128xf32> to vector<1xf32>
    %39 = vector.shape_cast %38 : vector<1xf32> to vector<1x1x1xf32>
    %40 = vector.extract %39[0, 0, 0] : f32 from vector<1x1x1xf32>
    %41 = arith.mulf %17, %17 : vector<32x128xf32>
    %42 = vector.shape_cast %41 : vector<32x128xf32> to vector<1x32x128xf32>
    %cst_19 = arith.constant dense<0.000000e+00> : vector<1xf32>
    %43 = vector.multi_reduction <add>, %42, %cst_19 [1, 2] : vector<1x32x128xf32> to vector<1xf32>
    %44 = vector.shape_cast %43 : vector<1xf32> to vector<1x1x1xf32>
    %45 = vector.extract %44[0, 0, 0] : f32 from vector<1x1x1xf32>
    %46 = tpu.iota {dimensions = array<i32: 1>} : vector<1x8x128xi32>
    %c0_i32 = arith.constant 0 : i32
    %47 = vector.broadcast %c0_i32 : i32 to vector<1x8x128xi32>
    %48 = arith.cmpi eq, %46, %47 : vector<1x8x128xi32>
    %49 = vector.broadcast %40 : f32 to vector<1x8x128xf32>
    %50 = vector.broadcast %45 : f32 to vector<1x8x128xf32>
    %51 = arith.select %48, %49, %50 : vector<1x8x128xi1>, vector<1x8x128xf32>
    %c0_20 = arith.constant 0 : index
    %c0_21 = arith.constant 0 : index
    %c0_22 = arith.constant 0 : index
    %52 = vector.load %arg7[%c0_20, %c0_21, %c0_22] : memref<1x8x128xf32, #tpu.memory_space<vmem>>, vector<1x8x128xf32>
    tpu.vector_store %arg7[%c0_20, %c0_21, %c0_22], %51 {strides = array<i32>} : memref<1x8x128xf32, #tpu.memory_space<vmem>>, vector<1x8x128xf32>,
    return
  }
  func.func @transform_0(%arg0: i32) -> (i32, i32, i32) {
    %c0_i32 = arith.constant 0 : i32
    %c0_i32_0 = arith.constant 0 : i32
    %c0_i32_1 = arith.constant 0 : i32
    return %arg0, %c0_i32, %c0_i32_0 : i32, i32, i32
  }
  func.func @transform_1(%arg0: i32) -> (i32, i32, i32) {
    %c0_i32 = arith.constant 0 : i32
    %c0_i32_0 = arith.constant 0 : i32
    %c0_i32_1 = arith.constant 0 : i32
    return %arg0, %c0_i32, %c0_i32_0 : i32, i32, i32
  }
  func.func @transform_2(%arg0: i32) -> (i32, i32) {
    %c0_i32 = arith.constant 0 : i32
    %c0_i32_0 = arith.constant 0 : i32
    %c0_i32_1 = arith.constant 0 : i32
    return %c0_i32, %c0_i32_0 : i32, i32
  }
  func.func @transform_3(%arg0: i32) -> (i32, i32) {
    %c0_i32 = arith.constant 0 : i32
    %c0_i32_0 = arith.constant 0 : i32
    %c0_i32_1 = arith.constant 0 : i32
    return %c0_i32, %c0_i32_0 : i32, i32
  }
  func.func @transform_4(%arg0: i32) -> (i32, i32) {
    %c0_i32 = arith.constant 0 : i32
    %c0_i32_0 = arith.constant 0 : i32
    %c0_i32_1 = arith.constant 0 : i32
    return %c0_i32, %c0_i32_0 : i32, i32
  }
  func.func @transform_5(%arg0: i32) -> (i32, i32, i32) {
    %c0_i32 = arith.constant 0 : i32
    %c0_i32_0 = arith.constant 0 : i32
    %c0_i32_1 = arith.constant 0 : i32
    return %arg0, %c0_i32, %c0_i32_0 : i32, i32, i32
  }
  func.func @transform_6(%arg0: i32) -> (i32, i32, i32) {
    %c0_i32 = arith.constant 0 : i32
    %c0_i32_0 = arith.constant 0 : i32
    %c0_i32_1 = arith.constant 0 : i32
    return %arg0, %c0_i32, %c0_i32_0 : i32, i32, i32
  }
}

</mosaic_0001>

<llo_original>
// kernel: plus_forward.1
$region0: #{plus_forward.1}
  #allocation0 [shape = 'u32[]', space=smem, size = 0x4, offset = 0x4, fixed_abs, tag = 'smem constant byte address 0x4 - core index']
  #allocation1 [shape = 'u32[144,128]{1,0:T(1,128)}', space=vmem, size = 0x12000, scoped, tag = 'internal scratch']
  %s0 = inlined_call_operand.hbm [shape: s32[1,1,128], index: 0, kind: input, shape index: {}]
  %s1 = inlined_call_operand.hbm [shape: s32[1,1,128], index: 1, kind: input, shape index: {}]
  %s2 = inlined_call_operand.hbm [shape: f32[32,10], index: 2, kind: input, shape index: {}]
  %s3 = inlined_call_operand.hbm [shape: f32[32,12], index: 3, kind: input, shape index: {}]
  %s4 = inlined_call_operand.hbm [shape: f32[32,1], index: 4, kind: input, shape index: {}]
  %s5 = inlined_call_operand.hbm [shape: f32[1,1,128], index: 5, kind: output, shape index: {0}]
  %s6 = inlined_call_operand.hbm [shape: f32[1,8,128], index: 6, kind: output, shape index: {1}]
  %7 = xla_tuple %s5, %s6
  %s8 = sld [smem:[#allocation0]]
  $region58: #{plus_forward.1} parent=0
    _
  %s10 = ssub.s32 1, %s8
  %s11 = scalar_select 0, %s10, %s8
  $region1: #{plus_forward.1} parent=0
    #allocation2 [shape = 'u8[512]{0}', space=vmem, size = 0x400, scoped, tag = 'input window, operand 0, single buffered']
    #allocation3 [shape = 's32[1]{0}', space=sflag, size = 0x4, scoped, tag = 'scoped memory for plus_forward.1']
    #allocation4 [shape = 's32[1]{0}', space=sflag, size = 0x4, scoped, tag = 'scoped memory for plus_forward.1']
    #allocation5 [shape = 'u8[512]{0}', space=vmem, size = 0x400, scoped, tag = 'input window, operand 1, single buffered']
    #allocation6 [shape = 's32[1]{0}', space=sflag, size = 0x4, scoped, tag = 'scoped memory for plus_forward.1']
    #allocation7 [shape = 'u8[16384]{0}', space=vmem, size = 0x4000, scoped, tag = 'input window, operand 2, single buffered']
    #allocation8 [shape = 'u8[16384]{0}', space=vmem, size = 0x4000, scoped, tag = 'input window, operand 3, single buffered']
    #allocation9 [shape = 's32[1]{0}', space=sflag, size = 0x4, scoped, tag = 'scoped memory for plus_forward.1']
    #allocation10 [shape = 'u8[16384]{0}', space=vmem, size = 0x4000, scoped, tag = 'input window, operand 4, single buffered']
    #allocation11 [shape = 'u8[512]{0}', space=vmem, size = 0x400, scoped, tag = 'output window, operand 0, single buffered']
    #allocation12 [shape = 'u8[4096]{0}', space=vmem, size = 0x1000, scoped, tag = 'output window, operand 1, single buffered']
    #allocation13 [shape = 's32[1]{0}', space=sflag, size = 0x4, scoped, tag = 'scoped memory for plus_forward.1']
    %12 = vsyncpa [#allocation3], 0
    %13 = vsyncpa [#allocation6], 0
    %14 = vsyncpa [#allocation9], 0
    %15 = vsyncpa [#allocation4], 0
    %16 = vsyncpa [#allocation13], 0
    // Predicated region
    $region2: #{plus_forward.1} parent=1 // pred_check
      _
    $region3: #{plus_forward.1} parent=1 // pred_check_branch
      %18 = sbr.rel (0) target = $region5
    $region4: #{plus_forward.1} parent=1 // pred_region
      %s20 = ssub.s32 16, 16
      %21 = vsyncadd [#allocation3], %s20
      %s23 = sshll.u32 [#allocation2], 4
      %s24 = int_to_ptr.vmem [resolvable:$true] %s23
      %26 = dma.hbm_to_vmem [thread:$0]  %s0, 16, %s24, [#allocation3]
    $region5: #{plus_forward.1} parent=1 // pred_fallthru
      _
    // Predicated region
    $region6: #{plus_forward.1} parent=1 // pred_check
      _
    $region7: #{plus_forward.1} parent=1 // pred_check_branch
      %28 = sbr.rel (0) target = $region9
    $region8: #{plus_forward.1} parent=1 // pred_region
      %s30 = ssub.s32 16, 16
      %31 = vsyncadd [#allocation6], %s30
      %s33 = sshll.u32 [#allocation5], 4
      %s34 = int_to_ptr.vmem [resolvable:$true] %s33
      %36 = dma.hbm_to_vmem [thread:$0]  %s1, 16, %s34, [#allocation6]
    $region9: #{plus_forward.1} parent=1 // pred_fallthru
      _
    // Predicated region
    $region10: #{plus_forward.1} parent=1 // pred_check
      _
    $region11: #{plus_forward.1} parent=1 // pred_check_branch
      %38 = sbr.rel (0) target = $region13
    $region12: #{plus_forward.1} parent=1 // pred_region
      %s40 = ssub.s32 512, 512
      %41 = vsyncadd [#allocation6], %s40
      %s42 = sshll.u32 [#allocation7], 4
      %s43 = int_to_ptr.vmem [resolvable:$true] %s42
      %48 = dma.hbm_to_vmem [thread:$0]  %s2, 512, %s43, [#allocation6], 128, 128, 8
    $region13: #{plus_forward.1} parent=1 // pred_fallthru
      _
    // Predicated region
    $region14: #{plus_forward.1} parent=1 // pred_check
      _
    $region15: #{plus_forward.1} parent=1 // pred_check_branch
      %50 = sbr.rel (0) target = $region17
    $region16: #{plus_forward.1} parent=1 // pred_region
      %s52 = ssub.s32 512, 512
      %53 = vsyncadd [#allocation9], %s52
      %s54 = sshll.u32 [#allocation8], 4
      %s55 = int_to_ptr.vmem [resolvable:$true] %s54
      %60 = dma.hbm_to_vmem [thread:$0]  %s3, 512, %s55, [#allocation9], 128, 128, 8
    $region17: #{plus_forward.1} parent=1 // pred_fallthru
      _
    // Predicated region
    $region18: #{plus_forward.1} parent=1 // pred_check
      _
    $region19: #{plus_forward.1} parent=1 // pred_check_branch
      %62 = sbr.rel (0) target = $region21
    $region20: #{plus_forward.1} parent=1 // pred_region
      %s64 = ssub.s32 512, 512
      %65 = vsyncadd [#allocation9], %s64
      %s66 = sshll.u32 [#allocation10], 4
      %s67 = int_to_ptr.vmem [resolvable:$true] %s66
      %72 = dma.hbm_to_vmem [thread:$0]  %s4, 512, %s67, [#allocation9], 128, 128, 8
    $region21: #{plus_forward.1} parent=1 // pred_fallthru
      _
    // Predicated region
    $region22: #{plus_forward.1} parent=1 // pred_check
      _
    $region23: #{plus_forward.1} parent=1 // pred_check_branch
      %74 = sbr.rel (0) target = $region25
    $region24: #{plus_forward.1} parent=1 // pred_region
      %75 = dma.done [#allocation3], 16
    $region25: #{plus_forward.1} parent=1 // pred_fallthru
      _
    // Predicated region
    $region26: #{plus_forward.1} parent=1 // pred_check
      _
    $region27: #{plus_forward.1} parent=1 // pred_check_branch
      %77 = sbr.rel (0) target = $region29
    $region28: #{plus_forward.1} parent=1 // pred_region
      %78 = dma.done [#allocation6], 16
    $region29: #{plus_forward.1} parent=1 // pred_fallthru
      _
    // Predicated region
    $region30: #{plus_forward.1} parent=1 // pred_check
      _
    $region31: #{plus_forward.1} parent=1 // pred_check_branch
      %80 = sbr.rel (0) target = $region33
    $region32: #{plus_forward.1} parent=1 // pred_region
      %81 = dma.done [#allocation6], 512
    $region33: #{plus_forward.1} parent=1 // pred_fallthru
      _
    // Predicated region
    $region34: #{plus_forward.1} parent=1 // pred_check
      _
    $region35: #{plus_forward.1} parent=1 // pred_check_branch
      %83 = sbr.rel (0) target = $region37
    $region36: #{plus_forward.1} parent=1 // pred_region
      %84 = dma.done [#allocation9], 512
    $region37: #{plus_forward.1} parent=1 // pred_fallthru
      _
    // Predicated region
    $region38: #{plus_forward.1} parent=1 // pred_check
      _
    $region39: #{plus_forward.1} parent=1 // pred_check_branch
      %86 = sbr.rel (0) target = $region41
    $region40: #{plus_forward.1} parent=1 // pred_region
      %87 = dma.done [#allocation9], 512
    $region41: #{plus_forward.1} parent=1 // pred_fallthru
      _
    %v88 = vld [vmem:[#allocation2] sm:$0x1]
    %v89 = vld [vmem:[#allocation5] sm:$0x1]
    %v90 = vlaneseq
    %v91 = vshrl.u32 %v90, 7
    %v92 = vadd.s32 %v91, 8
    %v93 = vlaneseq
    %v94 = vshrl.u32 %v93, 7
    %v95 = vsub.s32 0, %v94
    %v96 = vrot.slane %v88, %v95
    %vm97 = vcmp.eq.s32.totalorder %v91, %v96
    %vm98 = vcmp.eq.s32.totalorder %v92, %v96
    %v99 = vsel %vm97, 1, 0
    %v100 = vsel %vm98, 1, 0
    %v101 = vcvt.s32.f32 %v99
    %v102 = vcvt.s32.f32 %v100
    %v103 = vlaneseq
    %v104 = vshrl.u32 %v103, 7
    %v105 = vsub.s32 0, %v104
    %v106 = vrot.slane %v89, %v105
    %vm107 = vcmp.eq.s32.totalorder %v91, %v106
    %vm108 = vcmp.eq.s32.totalorder %v92, %v106
    %v109 = vsel %vm107, 1, 0
    %v110 = vsel %vm108, 1, 0
    %v111 = vcvt.s32.f32 %v109
    %v112 = vcvt.s32.f32 %v110
    %v113 = vld [vmem:[#allocation7] sm:$0xff]
    %v114 = vld [vmem:[#allocation7 + $0x8] sm:$0xff]
    %v115 = vld [vmem:[#allocation7 + $0x10] sm:$0xff]
    %v116 = vld [vmem:[#allocation7 + $0x18] sm:$0xff]
    %vm117 = vcmask 80896
    %v119 = vsel %vm117, %v113, 0
    %v122 = vsel %vm117, %v114, 0
    %v125 = vsel %vm117, %v115, 0
    %v128 = vsel %vm117, %v116, 0
    %vm130 = vcmask 1041408
    %v132 = vsel %vm130, %v102, 0
    %134 = vmatprep.subr.mxu0 0.0
    %135 = vmatpush1.msra.mxu0 %v101
    %136 = vmatprep.subr.mxu0 0.0
    %137 = vmatpush1.msra.mxu0 %v132
    %138 = vmatprep.subr.mxu0 0.0
    %139 = vmatpush1.msra.mxu0 0.0
    %140 = vmatprep.subr.mxu0 0.0
    %141 = vmatpush1.msra.mxu0 0.0
    %142 = vmatprep.subr.mxu0 0.0
    %143 = vmatpush1.msra.mxu0 0.0
    %144 = vmatprep.subr.mxu0 0.0
    %145 = vmatpush1.msra.mxu0 0.0
    %146 = vmatprep.subr.mxu0 0.0
    %147 = vmatpush1.msra.mxu0 0.0
    %148 = vmatprep.subr.mxu0 0.0
    %149 = vmatpush1.msra.mxu0 0.0
    %150 = vmatprep.subr.mxu0 0.0
    %151 = vmatpush1.msra.mxu0 0.0
    %152 = vmatprep.subr.mxu0 0.0
    %153 = vmatpush1.msra.mxu0 0.0
    %154 = vmatprep.subr.mxu0 0.0
    %155 = vmatpush1.msra.mxu0 0.0
    %156 = vmatprep.subr.mxu0 0.0
    %157 = vmatpush1.msra.mxu0 0.0
    %158 = vmatprep.subr.mxu0 0.0
    %159 = vmatpush1.msra.mxu0 0.0
    %160 = vmatprep.subr.mxu0 0.0
    %161 = vmatpush1.msra.mxu0 0.0
    %162 = vmatprep.subr.mxu0 0.0
    %163 = vmatpush1.msra.mxu0 0.0
    %164 = vmatprep.subr.mxu0 0.0
    %165 = vmatpush1.msra.mxu0 0.0
    %166 = vmatprep.subr.mxu0 0.0
    %167 = vmatpush1.msra.mxu0 0.0
    %168 = vmatprep.subr.mxu0 0.0
    %169 = vmatpush1.msra.mxu0 0.0
    %170 = vmatprep.subr.mxu0 0.0
    %171 = vmatpush1.msra.mxu0 0.0
    %172 = vmatprep.subr.mxu0 0.0
    %173 = vmatpush1.msra.mxu0 0.0
    %174 = vmatprep.subr.mxu0 0.0
    %175 = vmatpush1.msra.mxu0 0.0
    %176 = vmatprep.subr.mxu0 0.0
    %177 = vmatpush1.msra.mxu0 0.0
    %178 = vmatprep.subr.mxu0 0.0
    %179 = vmatpush1.msra.mxu0 0.0
    %180 = vmatprep.subr.mxu0 0.0
    %181 = vmatpush1.msra.mxu0 0.0
    %182 = vmatprep.subr.mxu0 0.0
    %183 = vmatpush1.msra.mxu0 0.0
    %184 = vmatprep.subr.mxu0 0.0
    %185 = vmatpush1.msra.mxu0 0.0
    %186 = vmatprep.subr.mxu0 0.0
    %187 = vmatpush1.msra.mxu0 0.0
    %188 = vmatprep.subr.mxu0 0.0
    %189 = vmatpush1.msra.mxu0 0.0
    %190 = vmatprep.subr.mxu0 0.0
    %191 = vmatpush1.msra.mxu0 0.0
    %192 = vmatprep.subr.mxu0 0.0
    %193 = vmatpush1.msra.mxu0 0.0
    %194 = vmatprep.subr.mxu0 0.0
    %195 = vmatpush1.msra.mxu0 0.0
    %196 = vmatprep.subr.mxu0 0.0
    %197 = vmatpush1.msra.mxu0 0.0
    %198 = vmatprep.mubr.f32.mxu0 0.0
    %199 = vmatmul.mubr.f32.gmra.mrb[0].mxu0 %v119
    %v200 = vpop.f32.mrb[0].mxu0
    %v201 = vadd.f32 0.0, %v200
    %v202 = vpop.f32.mrb[0].mxu0
    %203 = vmatprep.mubr.f32.mxu0 0.0
    %204 = vmatmul.mubr.f32.gmra.mrb[0].mxu0 %v122
    %v205 = vpop.f32.mrb[0].mxu0
    %v206 = vadd.f32 0.0, %v205
    %v207 = vpop.f32.mrb[0].mxu0
    %208 = vmatprep.mubr.f32.mxu0 0.0
    %209 = vmatmul.mubr.f32.gmra.mrb[0].mxu0 %v125
    %v210 = vpop.f32.mrb[0].mxu0
    %v211 = vadd.f32 0.0, %v210
    %v212 = vpop.f32.mrb[0].mxu0
    %213 = vmatprep.mubr.f32.mxu0 0.0
    %214 = vmatmul.mubr.f32.gmra.mrb[0].mxu0 %v128
    %v215 = vpop.f32.mrb[0].mxu0
    %v216 = vadd.f32 0.0, %v215
    %v217 = vpop.f32.mrb[0].mxu0
    %218 = vdwg.mxu0
    %v219 = vld [vmem:[#allocation8] sm:$0xff]
    %v220 = vld [vmem:[#allocation8 + $0x8] sm:$0xff]
    %v221 = vld [vmem:[#allocation8 + $0x10] sm:$0xff]
    %v222 = vld [vmem:[#allocation8 + $0x18] sm:$0xff]
    %vm223 = vcmask 97280
    %v225 = vsel %vm223, %v219, 0
    %v228 = vsel %vm223, %v220, 0
    %v231 = vsel %vm223, %v221, 0
    %v234 = vsel %vm223, %v222, 0
    %vm236 = vcmask 1043456
    %v238 = vsel %vm236, %v112, 0
    %240 = vmatprep.subr.mxu0 0.0
    %241 = vmatpush1.msra.mxu0 %v111
    %242 = vmatprep.subr.mxu0 0.0
    %243 = vmatpush1.msra.mxu0 %v238
    %244 = vmatprep.subr.mxu0 0.0
    %245 = vmatpush1.msra.mxu0 0.0
    %246 = vmatprep.subr.mxu0 0.0
    %247 = vmatpush1.msra.mxu0 0.0
    %248 = vmatprep.subr.mxu0 0.0
    %249 = vmatpush1.msra.mxu0 0.0
    %250 = vmatprep.subr.mxu0 0.0
    %251 = vmatpush1.msra.mxu0 0.0
    %252 = vmatprep.subr.mxu0 0.0
    %253 = vmatpush1.msra.mxu0 0.0
    %254 = vmatprep.subr.mxu0 0.0
    %255 = vmatpush1.msra.mxu0 0.0
    %256 = vmatprep.subr.mxu0 0.0
    %257 = vmatpush1.msra.mxu0 0.0
    %258 = vmatprep.subr.mxu0 0.0
    %259 = vmatpush1.msra.mxu0 0.0
    %260 = vmatprep.subr.mxu0 0.0
    %261 = vmatpush1.msra.mxu0 0.0
    %262 = vmatprep.subr.mxu0 0.0
    %263 = vmatpush1.msra.mxu0 0.0
    %264 = vmatprep.subr.mxu0 0.0
    %265 = vmatpush1.msra.mxu0 0.0
    %266 = vmatprep.subr.mxu0 0.0
    %267 = vmatpush1.msra.mxu0 0.0
    %268 = vmatprep.subr.mxu0 0.0
    %269 = vmatpush1.msra.mxu0 0.0
    %270 = vmatprep.subr.mxu0 0.0
    %271 = vmatpush1.msra.mxu0 0.0
    %272 = vmatprep.subr.mxu0 0.0
    %273 = vmatpush1.msra.mxu0 0.0
    %274 = vmatprep.subr.mxu0 0.0
    %275 = vmatpush1.msra.mxu0 0.0
    %276 = vmatprep.subr.mxu0 0.0
    %277 = vmatpush1.msra.mxu0 0.0
    %278 = vmatprep.subr.mxu0 0.0
    %279 = vmatpush1.msra.mxu0 0.0
    %280 = vmatprep.subr.mxu0 0.0
    %281 = vmatpush1.msra.mxu0 0.0
    %282 = vmatprep.subr.mxu0 0.0
    %283 = vmatpush1.msra.mxu0 0.0
    %284 = vmatprep.subr.mxu0 0.0
    %285 = vmatpush1.msra.mxu0 0.0
    %286 = vmatprep.subr.mxu0 0.0
    %287 = vmatpush1.msra.mxu0 0.0
    %288 = vmatprep.subr.mxu0 0.0
    %289 = vmatpush1.msra.mxu0 0.0
    %290 = vmatprep.subr.mxu0 0.0
    %291 = vmatpush1.msra.mxu0 0.0
    %292 = vmatprep.subr.mxu0 0.0
    %293 = vmatpush1.msra.mxu0 0.0
    %294 = vmatprep.subr.mxu0 0.0
    %295 = vmatpush1.msra.mxu0 0.0
    %296 = vmatprep.subr.mxu0 0.0
    %297 = vmatpush1.msra.mxu0 0.0
    %298 = vmatprep.subr.mxu0 0.0
    %299 = vmatpush1.msra.mxu0 0.0
    %300 = vmatprep.subr.mxu0 0.0
    %301 = vmatpush1.msra.mxu0 0.0
    %302 = vmatprep.subr.mxu0 0.0
    %303 = vmatpush1.msra.mxu0 0.0
    %304 = vmatprep.mubr.f32.mxu0 0.0
    %305 = vmatmul.mubr.f32.gmra.mrb[0].mxu0 %v225
    %v306 = vpop.f32.mrb[0].mxu0
    %v307 = vadd.f32 0.0, %v306
    %v308 = vpop.f32.mrb[0].mxu0
    %309 = vmatprep.mubr.f32.mxu0 0.0
    %310 = vmatmul.mubr.f32.gmra.mrb[0].mxu0 %v228
    %v311 = vpop.f32.mrb[0].mxu0
    %v312 = vadd.f32 0.0, %v311
    %v313 = vpop.f32.mrb[0].mxu0
    %314 = vmatprep.mubr.f32.mxu0 0.0
    %315 = vmatmul.mubr.f32.gmra.mrb[0].mxu0 %v231
    %v316 = vpop.f32.mrb[0].mxu0
    %v317 = vadd.f32 0.0, %v316
    %v318 = vpop.f32.mrb[0].mxu0
    %319 = vmatprep.mubr.f32.mxu0 0.0
    %320 = vmatmul.mubr.f32.gmra.mrb[0].mxu0 %v234
    %v321 = vpop.f32.mrb[0].mxu0
    %v322 = vadd.f32 0.0, %v321
    %v323 = vpop.f32.mrb[0].mxu0
    %324 = vdwg.mxu0
    %v325 = vld [vmem:[#allocation10] sm:$0xff]
    %v326 = vld [vmem:[#allocation10 + $0x8] sm:$0xff]
    %v327 = vld [vmem:[#allocation10 + $0x10] sm:$0xff]
    %v328 = vld [vmem:[#allocation10 + $0x18] sm:$0xff]
    %v329 = vmul.f32 %v325, %v325
    %v330 = vmul.f32 %v326, %v326
    %v331 = vmul.f32 %v327, %v327
    %v332 = vmul.f32 %v328, %v328
    %vm333 = vcmask 7168
    %v334 = vsel %vm333, %v329, 0.0
    %v335 = vsel %vm333, %v330, 0.0
    %v336 = vadd.f32 %v334, %v335
    %v337 = vsel %vm333, %v331, 0.0
    %v338 = vadd.f32 %v336, %v337
    %v339 = vsel %vm333, %v332, 0.0
    %v340 = vadd.f32 %v338, %v339
    %341 = vadd.xlane.f32.xlu0 %v340
    %v342 = vpop.xlane.xlu0 %341
    %v343 = vrot.slane %v342, 4
    %v344 = vadd.f32 %v342, %v343
    %v345 = vrot.slane %v344, 2
    %v346 = vadd.f32 %v344, %v345
    %v347 = vrot.slane %v346, 1
    %v348 = vadd.f32 %v346, %v347
    %s349 = vtos %v348
    %v350 = vstv %s349
    %v351 = vrsqrt.pop %v350
    %v352 = vmul.f32 %v350, %v351
    %vm353 = vcmp.eq.f32.partialorder %v350, inf
    %v354 = vsel %vm353, %v350, %v352
    %vm355 = vcmp.eq.f32.partialorder %v350, 0.0
    %v356 = vand.u32 %v350, 2147483648
    %v357 = vsel %vm355, %v356, %v354
    %s358 = vtos %v357
    %s359 = smax.f32 %s358, 1.0
    %v360 = vstv %s359
    %v361 = vrcp.pop %v360
    %v362 = vmul.f32 %v325, %v361
    %v363 = vmul.f32 %v326, %v361
    %v364 = vmul.f32 %v327, %v361
    %v365 = vmul.f32 %v328, %v361
    %v366 = vadd.f32 %v201, %v307
    %v367 = vadd.f32 %v206, %v312
    %v368 = vadd.f32 %v211, %v317
    %v369 = vadd.f32 %v216, %v322
    %371 = vset.pattern.permute.xlu0 0
    %372 = vperm.xlu0 %371, %v362
    %v373 = vpop.permute.xlu0 %372
    %376 = vset.pattern.permute.xlu0 0
    %377 = vperm.xlu0 %376, %v363
    %v378 = vpop.permute.xlu0 %377
    %381 = vset.pattern.permute.xlu0 0
    %382 = vperm.xlu0 %381, %v364
    %v383 = vpop.permute.xlu0 %382
    %386 = vset.pattern.permute.xlu0 0
    %387 = vperm.xlu0 %386, %v365
    %v388 = vpop.permute.xlu0 %387
    %v390 = vmul.f32 %v366, %v373
    %v391 = vmul.f32 %v367, %v378
    %v392 = vmul.f32 %v368, %v383
    %v393 = vmul.f32 %v369, %v388
    %v394 = vadd.f32 %v390, %v391
    %v395 = vadd.f32 %v394, %v392
    %v396 = vadd.f32 %v395, %v393
    %v397 = vrot.slane %v396, 4
    %v398 = vadd.f32 %v396, %v397
    %v399 = vrot.slane %v398, 2
    %v400 = vadd.f32 %v398, %v399
    %v401 = vrot.slane %v400, 1
    %v402 = vadd.f32 %v400, %v401
    %403 = vst [vmem:[#allocation11] sm:$0x1] %v402
    %v404 = vmul.f32 %v201, %v201
    %v405 = vmul.f32 %v206, %v206
    %v406 = vmul.f32 %v211, %v211
    %v407 = vmul.f32 %v216, %v216
    %v408 = vadd.f32 %v404, %v405
    %v409 = vadd.f32 %v408, %v406
    %v410 = vadd.f32 %v409, %v407
    %411 = vadd.xlane.f32.xlu0 %v410
    %v412 = vpop.xlane.xlu0 %411
    %v413 = vrot.slane %v412, 4
    %v414 = vadd.f32 %v412, %v413
    %v415 = vrot.slane %v414, 2
    %v416 = vadd.f32 %v414, %v415
    %v417 = vrot.slane %v416, 1
    %v418 = vadd.f32 %v416, %v417
    %s419 = vtos %v418
    %v420 = vmul.f32 %v307, %v307
    %v421 = vmul.f32 %v312, %v312
    %v422 = vmul.f32 %v317, %v317
    %v423 = vmul.f32 %v322, %v322
    %v424 = vadd.f32 %v420, %v421
    %v425 = vadd.f32 %v424, %v422
    %v426 = vadd.f32 %v425, %v423
    %427 = vadd.xlane.f32.xlu0 %v426
    %v428 = vpop.xlane.xlu0 %427
    %v429 = vrot.slane %v428, 4
    %v430 = vadd.f32 %v428, %v429
    %v431 = vrot.slane %v430, 2
    %v432 = vadd.f32 %v430, %v431
    %v433 = vrot.slane %v432, 1
    %v434 = vadd.f32 %v432, %v433
    %s435 = vtos %v434
    %vm436 = vcmp.eq.s32.totalorder %v91, 0
    %v437 = vstv %s419
    %v438 = vstv %s435
    %v439 = vsel %vm436, %v437, %v438
    %440 = vst [vmem:[#allocation12] sm:$0xff] %v439
    // Predicated region
    $region42: #{plus_forward.1} parent=1 // pred_check
      _
    $region43: #{plus_forward.1} parent=1 // pred_check_branch
      %442 = sbr.rel (0) target = $region45
    $region44: #{plus_forward.1} parent=1 // pred_region
      %s444 = ssub.s32 16, 16
      %445 = vsyncadd [#allocation4], %s444
      %s447 = sshll.u32 [#allocation11], 4
      %s448 = int_to_ptr.vmem [resolvable:$true] %s447
      %450 = dma.vmem_to_hbm [thread:$0]  %s448, 16, %s5, [#allocation4]
    $region45: #{plus_forward.1} parent=1 // pred_fallthru
      _
    // Predicated region
    $region46: #{plus_forward.1} parent=1 // pred_check
      _
    $region47: #{plus_forward.1} parent=1 // pred_check_branch
      %452 = sbr.rel (0) target = $region49
    $region48: #{plus_forward.1} parent=1 // pred_region
      %s454 = ssub.s32 128, 128
      %455 = vsyncadd [#allocation13], %s454
      %s457 = sshll.u32 [#allocation12], 4
      %s458 = int_to_ptr.vmem [resolvable:$true] %s457
      %460 = dma.vmem_to_hbm [thread:$0]  %s458, 128, %s6, [#allocation13]
    $region49: #{plus_forward.1} parent=1 // pred_fallthru
      _
    // Predicated region
    $region50: #{plus_forward.1} parent=1 // pred_check
      _
    $region51: #{plus_forward.1} parent=1 // pred_check_branch
      %462 = sbr.rel (0) target = $region53
    $region52: #{plus_forward.1} parent=1 // pred_region
      %463 = dma.done [#allocation4], 16
    $region53: #{plus_forward.1} parent=1 // pred_fallthru
      _
    // Predicated region
    $region54: #{plus_forward.1} parent=1 // pred_check
      _
    $region55: #{plus_forward.1} parent=1 // pred_check_branch
      %465 = sbr.rel (0) target = $region57
    $region56: #{plus_forward.1} parent=1 // pred_region
      %466 = dma.done [#allocation13], 128
    $region57: #{plus_forward.1} parent=1 // pred_fallthru
      _
    %467 = vsyncpa [#allocation3], 1
    %468 = vsyncpa [#allocation6], 1
    %469 = vsyncpa [#allocation9], 1
    %470 = vsyncpa [#allocation4], 1
    %471 = vsyncpa [#allocation13], 1

</llo_original>
